<compile_context>
chip_gen: v5e
topology: v5e:2x2
jax: 0.10.0
libtpu: 0.0.40
codegen_flags: <defaults>
</compile_context>

<pallas_src>
import functools

import jax
import jax.numpy as jnp
from jax.experimental import pallas as pl
from jax.experimental.pallas import tpu as pltpu

_LANES = 128
_SUBLANES = 8
_PACK = _LANES * _SUBLANES          # 1024: element alignment of padded inputs
_BLOCK_ROWS = 2048                  # rows of 128 lanes per grid step (~1-2 MiB)
_NUM_CORE_SPLITS = 2                # leading "parallel" axis (v7x megacore)
_MIN_PALLAS_BATCH = 1024            # below this, plain jnp beats kernel launch
_VMEM_LIMIT = 32 * 1024 * 1024


def _round_up(x, m):
    return ((x + m - 1) // m) * m


def _fold_to_vreg(vals):
    """Fold an (R, 128) f32 array into an (8, 128) partial sum (R % 8 == 0)."""
    return jnp.sum(vals.reshape(-1, _SUBLANES, _LANES), axis=0)


def _valid_mask(global_step, block_rows, batch):
    """Per-element validity mask for one (block_rows, 128) block.

    Masks (a) explicit zero-pad tail elements, (b) Pallas ragged-block garbage
    rows, (c) phantom steps of an uneven two-core split (whose index_map was
    clamped) -- all via a single flat-index < batch comparison.
    """
    row = jax.lax.broadcasted_iota(jnp.int32, (block_rows, _LANES), 0)
    lane = jax.lax.broadcasted_iota(jnp.int32, (block_rows, _LANES), 1)
    flat = (global_step * block_rows + row) * _LANES + lane
    return flat < batch


# ----------------------------------------------------------------- kernels
def _ranking_loss_kernel(margin_ref, y_ref, o_ref, acc_ref, *,
                         batch, block_rows, steps_per_core):
    """Pairwise margin ranking loss partial sums.

    margin_ref : SMEM (1,) f32                      -- scalar-prefetched margin
    y_ref      : VMEM (2, block_rows, 128)          -- [0]=pos scores, [1]=neg
    o_ref      : VMEM (8, 128) f32                  -- this core's partial sum
    acc_ref    : VMEM (8, 128) f32 scratch          -- running partial sum
    """
    c = pl.program_id(0)
    i = pl.program_id(1)

    @pl.when(i == 0)
    def _():
        acc_ref[...] = jnp.zeros_like(acc_ref)

    pos = jax.nn.sigmoid(y_ref[0].astype(jnp.float32))   # (block_rows, 128)
    neg = jax.nn.sigmoid(y_ref[1].astype(jnp.float32))
    per_pair = jnp.maximum(margin_ref[0] - pos + neg, 0.0)

    global_step = c * steps_per_core + i
    per_pair = jnp.where(_valid_mask(global_step, block_rows, batch),
                         per_pair, 0.0)

    acc_ref[...] += _fold_to_vreg(per_pair)

    @pl.when(i == pl.num_programs(1) - 1)
    def _():
        o_ref[...] = acc_ref[...]


def _mse_loss_kernel(p_ref, t_ref, o_ref, acc_ref, *,
                     batch, block_rows, steps_per_core):
    """MSE(sigmoid(pred), true) partial sums on (block_rows, 128) blocks."""
    c = pl.program_id(0)
    i = pl.program_id(1)

    @pl.when(i == 0)
    def _():
        acc_ref[...] = jnp.zeros_like(acc_ref)

    p = jax.nn.sigmoid(p_ref[...].astype(jnp.float32))
    t = t_ref[...].astype(jnp.float32)                 # upcast, never downcast
    diff = p - t
    sq = diff * diff

    global_step = c * steps_per_core + i
    sq = jnp.where(_valid_mask(global_step, block_rows, batch), sq, 0.0)

    acc_ref[...] += _fold_to_vreg(sq)

    @pl.when(i == pl.num_programs(1) - 1)
    def _():
        o_ref[...] = acc_ref[...]


# ----------------------------------------------------------------- jnp fallback
def _jnp_ranking_loss(y_pred, margin):
    y = jax.nn.sigmoid(y_pred.astype(jnp.float32))
    return jnp.mean(jnp.maximum(margin - y[:, 0] + y[:, 1], 0.0))


def _jnp_mse_loss(y_pred, y_true):
    p = jax.nn.sigmoid(y_pred.astype(jnp.float32)).reshape(-1)
    t = y_true.astype(jnp.float32).reshape(-1)
    return jnp.mean((p - t) ** 2)


# ----------------------------------------------------------------- wrappers
def _tiling(batch, block_rows):
    b_pad = _round_up(batch, _PACK)
    rows = b_pad // _LANES                               # multiple of 8
    br = min(_round_up(block_rows, _SUBLANES), rows)     # multiple of 8, <= rows
    total_steps = pl.cdiv(rows, br)
    spc = pl.cdiv(total_steps, _NUM_CORE_SPLITS)         # inner steps per split
    return b_pad, rows, br, total_steps, spc


def _pallas_ranking_loss(y_pred, margin, block_rows):
    batch = y_pred.shape[0]
    b_pad, rows, br, total_steps, spc = _tiling(batch, block_rows)

    if b_pad != batch:                                    # fused with transpose
        y_pred = jnp.pad(y_pred, ((0, b_pad - batch), (0, 0)))
    # (b_pad, 2) -> (2, rows, 128): one transpose pass, reshape is free.
    y3 = y_pred.T.reshape(2, rows, _LANES)
    margin_arr = jnp.asarray([margin], dtype=jnp.float32)

    def y_map(c, i, _margin):
        return (0, jnp.minimum(c * spc + i, total_steps - 1), 0)

    kernel = functools.partial(_ranking_loss_kernel, batch=batch,
                               block_rows=br, steps_per_core=spc)
    partials = pl.pallas_call(
        kernel,
        out_shape=jax.ShapeDtypeStruct(
            (_NUM_CORE_SPLITS * _SUBLANES, _LANES), jnp.float32),
        grid_spec=pltpu.PrefetchScalarGridSpec(
            num_scalar_prefetch=1,
            grid=(_NUM_CORE_SPLITS, spc),
            in_specs=[pl.BlockSpec((2, br, _LANES), y_map)],
            out_specs=pl.BlockSpec((_SUBLANES, _LANES),
                                   lambda c, i, _margin: (c, 0)),
            scratch_shapes=[pltpu.VMEM((_SUBLANES, _LANES), jnp.float32)],
        ),
        compiler_params=pltpu.CompilerParams(
            dimension_semantics=("parallel", "arbitrary"),
            vmem_limit_bytes=_VMEM_LIMIT),
        cost_estimate=pl.CostEstimate(
            flops=8 * batch, transcendentals=4 * batch,
            bytes_accessed=8 * batch),
    )(margin_arr, y3)
    return jnp.sum(partials) / batch


def _pallas_mse_loss(y_pred, y_true, block_rows):
    batch = y_pred.shape[0]
    b_pad, rows, br, total_steps, spc = _tiling(batch, block_rows)

    p = y_pred.reshape(batch)                            # free reshapes
    t = y_true.reshape(batch)                            # keep label dtype
    if b_pad != batch:
        p = jnp.pad(p, (0, b_pad - batch))
        t = jnp.pad(t, (0, b_pad - batch))
    p2 = p.reshape(rows, _LANES)
    t2 = t.reshape(rows, _LANES)

    def x_map(c, i):
        return (jnp.minimum(c * spc + i, total_steps - 1), 0)

    kernel = functools.partial(_mse_loss_kernel, batch=batch,
                               block_rows=br, steps_per_core=spc)
    partials = pl.pallas_call(
        kernel,
        out_shape=jax.ShapeDtypeStruct(
            (_NUM_CORE_SPLITS * _SUBLANES, _LANES), jnp.float32),
        grid_spec=pltpu.PrefetchScalarGridSpec(
            num_scalar_prefetch=0,
            grid=(_NUM_CORE_SPLITS, spc),
            in_specs=[pl.BlockSpec((br, _LANES), x_map),
                      pl.BlockSpec((br, _LANES), x_map)],
            out_specs=pl.BlockSpec((_SUBLANES, _LANES), lambda c, i: (c, 0)),
            scratch_shapes=[pltpu.VMEM((_SUBLANES, _LANES), jnp.float32)],
        ),
        compiler_params=pltpu.CompilerParams(
            dimension_semantics=("parallel", "arbitrary"),
            vmem_limit_bytes=_VMEM_LIMIT),
        cost_estimate=pl.CostEstimate(
            flops=4 * batch, transcendentals=2 * batch,
            bytes_accessed=16 * batch),
    )(p2, t2)
    return jnp.sum(partials) / batch


def pairwise_margin_loss(y_pred, y_true=None, *, margin=1.0,
                         block_rows=_BLOCK_ROWS,
                         min_pallas_batch=_MIN_PALLAS_BATCH):
    """JAX/Pallas equivalent of PairwiseMarginLoss.forward; returns f32 scalar."""
    if y_pred.shape[-1] == 2:
        assert y_true is None, "ranking loss expects no labels"
        batch = y_pred.shape[0]
        if batch < min_pallas_batch:
            return _jnp_ranking_loss(y_pred, margin)
        return _pallas_ranking_loss(y_pred, margin, block_rows)

    assert y_pred.shape[-1] == 1
    assert y_true is not None
    batch = y_pred.shape[0]
    if batch < min_pallas_batch:
        return _jnp_mse_loss(y_pred, y_true)
    return _pallas_mse_loss(y_pred, y_true, block_rows)


# ----------------------------------------------------------------- main
if __name__ == "__main__":
    key = jax.random.PRNGKey(0)
    k1, k2, k3, k4 = jax.random.split(key, 4)
    margin = 0.5

    # --- ranking path (Pallas kernel); unaligned batch exercises the mask ---
    batch = 4099
    y_rank = jax.random.normal(k1, (batch, 2), dtype=jnp.float32)
    got_rank = jax.block_until_ready(pairwise_margin_loss(y_rank, margin=margin))
    ref_rank = _jnp_ranking_loss(y_rank, margin)
    assert jnp.allclose(got_rank, ref_rank, atol=1e-5, rtol=1e-5), (got_rank, ref_rank)

    # small block_rows forces a multi-step grid + the two-way split/clamp path
    got_rank_mb = jax.block_until_ready(
        pairwise_margin_loss(y_rank, margin=margin, block_rows=16))
    assert jnp.allclose(got_rank_mb, ref_rank, atol=1e-5, rtol=1e-5), (got_rank_mb, ref_rank)

    # --- MSE / validation path (Pallas kernel) -------------------------------
    y_mse = jax.random.normal(k2, (batch, 1), dtype=jnp.float32)
    y_true = jax.random.uniform(k3, (batch, 1), dtype=jnp.float32)
    got_mse = jax.block_until_ready(pairwise_margin_loss(y_mse, y_true, margin=margin))
    ref_mse = _jnp_mse_loss(y_mse, y_true)
    assert jnp.allclose(got_mse, ref_mse, atol=1e-5, rtol=1e-5), (got_mse, ref_mse)

    got_mse_mb = jax.block_until_ready(
        pairwise_margin_loss(y_mse, y_true, margin=margin, block_rows=16))
    assert jnp.allclose(got_mse_mb, ref_mse, atol=1e-5, rtol=1e-5), (got_mse_mb, ref_mse)

    # --- tiny batch takes the jnp fallback (launch overhead dominates there) --
    y_tiny = jax.random.normal(k4, (8, 2), dtype=jnp.float32)
    got_tiny = jax.block_until_ready(pairwise_margin_loss(y_tiny, margin=margin))
    ref_tiny = _jnp_ranking_loss(y_tiny, margin)
    assert jnp.allclose(got_tiny, ref_tiny, atol=1e-6), (got_tiny, ref_tiny)

    print("KERNEL_OK")
</pallas_src>

<mosaic_0001>
module attributes {stable_mosaic.version = 11 : i64} {
  func.func @_ranking_loss_kernel(%arg0: i32, %arg1: i32, %arg2: memref<1xf32, #tpu.memory_space<smem>>, %arg3: memref<2x40x128xf32, #tpu.memory_space<vmem>>, %arg4: memref<8x128xf32, #tpu.memory_space<vmem>>, %arg5: memref<8x128xf32, #tpu.memory_space<vmem>>) attributes {dimension_semantics = [#tpu.dimension_semantics<parallel>, #tpu.dimension_semantics<arbitrary>], iteration_bounds = array<i64: 2, 1>, scalar_prefetch = 1 : i64, scratch_operands = 1 : i64, tpu.core_type = #tpu.core_type<tc>, window_params = [{transform_indices = @transform_0, window_bounds = array<i64: 2, 40, 128>}, {transform_indices = @transform_1, window_bounds = array<i64: 8, 128>}]} {
    %c0_i32 = arith.constant 0 : i32
    %0 = arith.cmpi eq, %arg1, %c0_i32 : i32
    %1 = arith.extui %0 : i1 to i32
    %c0_i32_0 = arith.constant 0 : i32
    %2 = arith.cmpi ne, %1, %c0_i32_0 : i32
    scf.if %2 {
      %cst_16 = arith.constant 0.000000e+00 : f32
      %45 = vector.broadcast %cst_16 : f32 to vector<8x128xf32>
      %c0_17 = arith.constant 0 : index
      %c0_18 = arith.constant 0 : index
      %46 = vector.load %arg5[%c0_17, %c0_18] : memref<8x128xf32, #tpu.memory_space<vmem>>, vector<8x128xf32>
      tpu.vector_store %arg5[%c0_17, %c0_18], %45 {strides = array<i32>} : memref<8x128xf32, #tpu.memory_space<vmem>>, vector<8x128xf32>,
    } else {
    }
    %c0 = arith.constant 0 : index
    %c0_1 = arith.constant 0 : index
    %c0_2 = arith.constant 0 : index
    %3 = vector.load %arg3[%c0, %c0_1, %c0_2] : memref<2x40x128xf32, #tpu.memory_space<vmem>>, vector<1x40x128xf32>
    %4 = vector.shape_cast %3 : vector<1x40x128xf32> to vector<40x128xf32>
    %5 = arith.negf %4 : vector<40x128xf32>
    %6 = math.exp %5 : vector<40x128xf32>
    %cst = arith.constant 1.000000e+00 : f32
    %7 = vector.broadcast %cst : f32 to vector<40x128xf32>
    %8 = arith.addf %7, %6 : vector<40x128xf32>
    %9 = arith.divf %7, %8 : vector<40x128xf32>
    %c1 = arith.constant 1 : index
    %c0_3 = arith.constant 0 : index
    %c0_4 = arith.constant 0 : index
    %10 = vector.load %arg3[%c1, %c0_3, %c0_4] : memref<2x40x128xf32, #tpu.memory_space<vmem>>, vector<1x40x128xf32>
    %11 = vector.shape_cast %10 : vector<1x40x128xf32> to vector<40x128xf32>
    %12 = arith.negf %11 : vector<40x128xf32>
    %13 = math.exp %12 : vector<40x128xf32>
    %cst_5 = arith.constant 1.000000e+00 : f32
    %14 = vector.broadcast %cst_5 : f32 to vector<40x128xf32>
    %15 = arith.addf %14, %13 : vector<40x128xf32>
    %16 = arith.divf %14, %15 : vector<40x128xf32>
    %c0_6 = arith.constant 0 : index
    %17 = memref.load %arg2[%c0_6] : memref<1xf32, #tpu.memory_space<smem>>
    %18 = vector.broadcast %17 : f32 to vector<40x128xf32>
    %19 = arith.subf %18, %9 : vector<40x128xf32>
    %20 = arith.addf %19, %16 : vector<40x128xf32>
    %cst_7 = arith.constant 0.000000e+00 : f32
    %21 = vector.broadcast %cst_7 : f32 to vector<40x128xf32>
    %22 = arith.maximumf %20, %21 : vector<40x128xf32>
    %c1_i32 = arith.constant 1 : i32
    %23 = arith.muli %arg0, %c1_i32 : i32
    %24 = arith.addi %23, %arg1 : i32
    %25 = tpu.iota {dimensions = array<i32: 0>} : vector<40x128xi32>
    %26 = tpu.iota {dimensions = array<i32: 1>} : vector<40x128xi32>
    %c40_i32 = arith.constant 40 : i32
    %27 = arith.muli %24, %c40_i32 : i32
    %28 = vector.broadcast %27 : i32 to vector<40x128xi32>
    %29 = arith.addi %28, %25 : vector<40x128xi32>
    %c128_i32 = arith.constant 128 : i32
    %30 = vector.broadcast %c128_i32 : i32 to vector<40x128xi32>
    %31 = arith.muli %29, %30 : vector<40x128xi32>
    %32 = arith.addi %31, %26 : vector<40x128xi32>
    %c4099_i32 = arith.constant 4099 : i32
    %33 = vector.broadcast %c4099_i32 : i32 to vector<40x128xi32>
    %34 = arith.cmpi slt, %32, %33 : vector<40x128xi32>
    %cst_8 = arith.constant 0.000000e+00 : f32
    %35 = vector.broadcast %cst_8 : f32 to vector<40x128xf32>
    %36 = arith.select %34, %22, %35 : vector<40x128xi1>, vector<40x128xf32>
    %c0_9 = arith.constant 0 : index
    %c0_10 = arith.constant 0 : index
    %37 = vector.load %arg5[%c0_9, %c0_10] : memref<8x128xf32, #tpu.memory_space<vmem>>, vector<8x128xf32>
    %38 = vector.shape_cast %36 : vector<40x128xf32> to vector<5x8x128xf32>
    %cst_11 = arith.constant dense<0.000000e+00> : vector<8x128xf32>
    %39 = vector.multi_reduction <add>, %38, %cst_11 [0] : vector<5x8x128xf32> to vector<8x128xf32>
    %40 = arith.addf %37, %39 : vector<8x128xf32>
    %c0_12 = arith.constant 0 : index
    %c0_13 = arith.constant 0 : index
    %41 = vector.load %arg5[%c0_12, %c0_13] : memref<8x128xf32, #tpu.memory_space<vmem>>, vector<8x128xf32>
    tpu.vector_store %arg5[%c0_12, %c0_13], %40 {strides = array<i32>} : memref<8x128xf32, #tpu.memory_space<vmem>>, vector<8x128xf32>,
    %c0_i32_14 = arith.constant 0 : i32
    %42 = arith.cmpi eq, %arg1, %c0_i32_14 : i32
    %43 = arith.extui %42 : i1 to i32
    %c0_i32_15 = arith.constant 0 : i32
    %44 = arith.cmpi ne, %43, %c0_i32_15 : i32
    scf.if %44 {
      %c0_16 = arith.constant 0 : index
      %c0_17 = arith.constant 0 : index
      %45 = vector.load %arg5[%c0_16, %c0_17] : memref<8x128xf32, #tpu.memory_space<vmem>>, vector<8x128xf32>
      %c0_18 = arith.constant 0 : index
      %c0_19 = arith.constant 0 : index
      %46 = vector.load %arg4[%c0_18, %c0_19] : memref<8x128xf32, #tpu.memory_space<vmem>>, vector<8x128xf32>
      tpu.vector_store %arg4[%c0_18, %c0_19], %45 {strides = array<i32>} : memref<8x128xf32, #tpu.memory_space<vmem>>, vector<8x128xf32>,
    } else {
    }
    return
  }
  func.func @transform_0(%arg0: i32, %arg1: i32, %arg2: memref<1xf32, #tpu.memory_space<smem>>) -> (i32, i32, i32) {
    %c1_i32 = arith.constant 1 : i32
    %0 = arith.muli %arg0, %c1_i32 : i32
    %1 = arith.addi %0, %arg1 : i32
    %c0_i32 = arith.constant 0 : i32
    %2 = arith.minsi %1, %c0_i32 : i32
    %c0_i32_0 = arith.constant 0 : i32
    %c0_i32_1 = arith.constant 0 : i32
    %c0_i32_2 = arith.constant 0 : i32
    return %c0_i32_0, %2, %c0_i32_1 : i32, i32, i32
  }
  func.func @transform_1(%arg0: i32, %arg1: i32, %arg2: memref<1xf32, #tpu.memory_space<smem>>) -> (i32, i32) {
    %c0_i32 = arith.constant 0 : i32
    %c0_i32_0 = arith.constant 0 : i32
    return %arg0, %c0_i32 : i32, i32
  }
}

</mosaic_0001>

<llo_original>
// kernel: tpu_custom_call.1
$region0: #{tpu_custom_call.1}
  #allocation0 [shape = 'u32[]', space=smem, size = 0x4, offset = 0x4, fixed_abs, tag = 'smem constant byte address 0x4 - core index']
  #allocation1 [shape = 'u32[72,128]{1,0:T(1,128)}', space=vmem, size = 0x9000, scoped, tag = 'internal scratch']
  #allocation2 [shape = 'f32[8,128]{1,0:T(8,128)}', space=vmem, size = 0x1000, scoped, tag = 'scratch operand']
  #allocation3 [shape = 's32[1]{0}', space=sflag, size = 0x4, scoped, tag = 'scoped memory for tpu_custom_call.1']
  #allocation4 [shape = 'f32[1]{0:T(128)S(6)}', space=smem, size = 0x200, scoped, tag = 'prefetched SMEM operand 0']
  %s0 = inlined_call_operand.<no memory space> [shape: f32[1], index: 0, kind: input, shape index: {}]
  %s1 = inlined_call_operand.hbm [shape: f32[2,40,128], index: 1, kind: input, shape index: {}]
  %s2 = inlined_call_operand.hbm [shape: f32[16,128], index: 2, kind: output, shape index: {}]
  %s3 = sld [smem:[#allocation0]]
  $region49: #{tpu_custom_call.1} parent=0
    _
  %s5 = ssub.s32 1, %s3
  %s6 = scalar_select 0, %s5, %s3
  %7 = sst [smem:[#allocation4]] %s0
  $region1: #{tpu_custom_call.1} parent=0
    #allocation5 [shape = 'u8[81920]{0}', space=vmem, size = 0x14000, scoped, tag = 'input window, operand 1']
    #allocation6 [shape = 's32[2]{0}', space=sflag, size = 0x8, scoped, tag = 'scoped memory for tpu_custom_call.1']
    #allocation7 [shape = 's32[2]{0}', space=sflag, size = 0x8, scoped, tag = 'scoped memory for tpu_custom_call.1']
    #allocation8 [shape = 'u8[8192]{0}', space=vmem, size = 0x2000, scoped, tag = 'output window, operand 0']
    %8 = vsyncpa [#allocation6], 0
    %s9 = scalar_lea.sflag [#allocation6], 1
    %10 = vsyncpa %s9, 0
    %11 = vsyncpa [#allocation7], 0
    %s12 = scalar_lea.sflag [#allocation7], 1
    %13 = vsyncpa %s12, 0
    loop: start=0, step=1, limit=4
    $region2: #{tpu_custom_call.1} parent=1 // loop_pre_header
      _
    $region3: #{tpu_custom_call.1} parent=1 // loop_header
      %s15 = sphi 0, %s19
      %p16 = scmp.ge.s32.totalorder %s15, 4
      %s22 = sphi 0, %s34
      %s23 = sphi 0, %s30
      %s24 = sphi 0, %s22
      %s25 = sphi 0, %s23
      %s26 = sphi 0, %s24
      %s27 = sphi 0, %s25
      %s43 = sphi 0, %s45
      %s46 = sphi 0, %s43
      %s47 = sphi 0, %s46
      %s63 = sphi 0, %s47
      %s69 = sphi 0, %s71
      %s72 = sphi 0, %s69
      %s73 = sphi 0, %s72
      %s89 = sphi 0, %s73
    $region4: #{tpu_custom_call.1} parent=1 // loop_header_branch
      %18 = sbr.rel (%p16) target = $region8
    $region5: #{tpu_custom_call.1} parent=1 // loop_body
      %s20 = ssub.s32 %s15, 1
      %s21 = ssub.s32 %s15, 2
      %s28 = sadd.s32 1, %s23
      %p29 = scmp.ge.s32.totalorder %s28, 1
      %s30 = scalar_select %p29, 0, %s28
      %s31 = sadd.s32 1, %s22
      %s32 = scalar_select %p29, %s31, %s22
      %p33 = scmp.ge.s32.totalorder %s32, 2
      %s34 = scalar_select %p33, 0, %s32
      %s35 = sadd.s32 %s22, %s23
      %p36 = scmp.lt.s32.totalorder %s35, 0
      %s37 = scalar_select %p36, %s35, 0
      %s38 = sadd.s32 %s34, %s30
      %p39 = scmp.lt.s32.totalorder %s38, 0
      %s40 = scalar_select %p39, %s38, 0
      %s41 = ssub.s32 %s37, %s40
      %p42 = scmp.eq.s32.totalorder %s41, 0
      %s44 = sadd.s32 %s43, 1
      %s45 = scalar_select %p42, %s43, %s44
      %p48 = pneg %p42
      %p49 = scmp.eq.s32.totalorder %s15, 1
      %p50 = por %p48, %p49
      %p51 = scmp.ne.s32.totalorder %s43, %s46
      %p52 = scmp.eq.s32.totalorder %s15, 0
      %p53 = por %p51, %p52
      %p54 = scmp.ne.s32.totalorder %s43, %s46
      %p55 = scmp.eq.s32.totalorder %s20, 1
      %p56 = por %p54, %p55
      %p57 = scmp.ne.s32.totalorder %s46, %s47
      %p58 = scmp.eq.s32.totalorder %s20, 0
      %p59 = por %p57, %p58
      %p60 = scmp.ne.s32.totalorder %s46, %s47
      %p61 = scmp.eq.s32.totalorder %s21, 1
      %p62 = por %p60, %p61
      %p64 = scmp.ne.s32.totalorder %s47, %s63
      %p65 = scmp.eq.s32.totalorder %s21, 0
      %p66 = por %p64, %p65
      %s67 = ssub.s32 %s22, %s34
      %p68 = scmp.eq.s32.totalorder %s67, 0
      %s70 = sadd.s32 %s69, 1
      %s71 = scalar_select %p68, %s69, %s70
      %p74 = pneg %p68
      %p75 = scmp.eq.s32.totalorder %s15, 1
      %p76 = por %p74, %p75
      %p77 = scmp.ne.s32.totalorder %s69, %s72
      %p78 = scmp.eq.s32.totalorder %s15, 0
      %p79 = por %p77, %p78
      %p80 = scmp.ne.s32.totalorder %s69, %s72
      %p81 = scmp.eq.s32.totalorder %s20, 1
      %p82 = por %p80, %p81
      %p83 = scmp.ne.s32.totalorder %s72, %s73
      %p84 = scmp.eq.s32.totalorder %s20, 0
      %p85 = por %p83, %p84
      %p86 = scmp.ne.s32.totalorder %s72, %s73
      %p87 = scmp.eq.s32.totalorder %s21, 1
      %p88 = por %p86, %p87
      %p90 = scmp.ne.s32.totalorder %s73, %s89
      %p91 = scmp.eq.s32.totalorder %s21, 0
      %p92 = por %p90, %p91
      %p93 = scmp.le.s32.totalorder 1, %s15
      %p94 = scmp.lt.s32.totalorder %s15, 3
      %p95 = pnand %p93, %p94
      %p96 = pneg %p95
      // Predicated region
      $region9: #{tpu_custom_call.1} parent=5 // pred_check
        _
      $region10: #{tpu_custom_call.1} parent=5 // pred_check_branch
        %98 = sbr.rel (%p95) target = $region12
      $region11: #{tpu_custom_call.1} parent=5 // pred_region
        %s99 = ssub.s32 %s15, 1
      $region12: #{tpu_custom_call.1} parent=5 // pred_fallthru
        _
      %p100 = scmp.lt.s32.totalorder %s15, 2
      // Predicated region
      $region13: #{tpu_custom_call.1} parent=5 // pred_check
        %p101 = pneg %p100
      $region14: #{tpu_custom_call.1} parent=5 // pred_check_branch
        %103 = sbr.rel (%p101) target = $region16
      $region15: #{tpu_custom_call.1} parent=5 // pred_region
        // Predicated region
        $region17: #{tpu_custom_call.1} parent=15 // pred_check
          %p104 = pneg %p53
        $region18: #{tpu_custom_call.1} parent=15 // pred_check_branch
          %106 = sbr.rel (%p104) target = $region20
        $region19: #{tpu_custom_call.1} parent=15 // pred_region
          %s107 = sand.u32 %s43, 1
          %s108 = scalar_lea.sflag [#allocation6], %s107
          %s109 = sand.u32 %s43, 1
          %s110 = smul.addr %s109, 80
          %s111 = scalar_lea.vmem [#allocation5], %s110
          %s112 = sadd.s32 %s22, %s23
          %p113 = scmp.lt.s32.totalorder %s112, 0
          %s114 = scalar_select %p113, %s112, 0
          %s115 = smul.u32 5, %s114
          %117 = vsyncadd %s108, 0
          %s118 = smul.addr %s115, 8
          %s119 = scalar_lea.hbm %s1, %s118
          %s120 = sshll.u32 %s119, 4
          %s121 = int_to_ptr.hbm [resolvable:$true] %s120
          %s122 = sshll.u32 %s111, 4
          %s123 = int_to_ptr.vmem [resolvable:$true] %s122
          %128 = dma.hbm_to_vmem [thread:$0]  %s121, 1280, %s123, %s108, 128, 128, 8
        $region20: #{tpu_custom_call.1} parent=15 // pred_fallthru
          _
      $region16: #{tpu_custom_call.1} parent=5 // pred_fallthru
        _
      %p129 = scmp.le.s32.totalorder 1, %s15
      %p130 = scmp.lt.s32.totalorder %s15, 3
      %p131 = pnand %p129, %p130
      %p132 = pneg %p131
      // Predicated region
      $region21: #{tpu_custom_call.1} parent=5 // pred_check
        _
      $region22: #{tpu_custom_call.1} parent=5 // pred_check_branch
        %134 = sbr.rel (%p131) target = $region24
      $region23: #{tpu_custom_call.1} parent=5 // pred_region
        %s135 = ssub.s32 %s15, 1
        %s136 = sand.u32 %s46, 1
        %s137 = scalar_lea.sflag [#allocation6], %s136
        %s138 = sand.u32 %s46, 1
        %s139 = smul.addr %s138, 80
        %s140 = scalar_lea.vmem [#allocation5], %s139
        // Predicated region
        $region25: #{tpu_custom_call.1} parent=23 // pred_check
          %p141 = pneg %p59
        $region26: #{tpu_custom_call.1} parent=23 // pred_check_branch
          %143 = sbr.rel (%p141) target = $region28
        $region27: #{tpu_custom_call.1} parent=23 // pred_region
          %145 = dma.done %s137, 1280
        $region28: #{tpu_custom_call.1} parent=23 // pred_fallthru
          _
        %s146 = sand.u32 %s46, 1
        %s147 = scalar_lea.sflag [#allocation6], %s146
        %s148 = sand.u32 %s46, 1
        %s149 = smul.addr %s148, 80
        %s150 = scalar_lea.vmem [#allocation5], %s149
        %p151 = pneg %p59
        %p152 = pneg %p56
        %p153 = pneg %p85
        %p154 = pneg %p82
        %s155 = sand.u32 %s72, 1
        %s156 = scalar_lea.sflag [#allocation7], %s155
        %s157 = sand.u32 %s72, 1
        %s158 = smul.addr %s157, 8
        %s159 = scalar_lea.vmem [#allocation8], %s158
        %s160 = sadd.s32 %s24, %s25
        %p161 = scmp.lt.s32.totalorder %s160, 0
        %s162 = scalar_select %p161, %s160, 0
        %s163 = smul.u32 5, %s162
        %p164 = scmp.eq.s32.totalorder %s25, 0
        // Predicated region
        $region29: #{tpu_custom_call.1} parent=23 // pred_check
          %p165 = pneg %p164
        $region30: #{tpu_custom_call.1} parent=23 // pred_check_branch
          %167 = sbr.rel (%p165) target = $region32
        $region31: #{tpu_custom_call.1} parent=23 // pred_region
          %168 = vst [vmem:[#allocation2] sm:$0xff] 0.0
        $region32: #{tpu_custom_call.1} parent=23 // pred_fallthru
          _
        %v169 = vld [vmem:[%s140] sm:$0xff]
        %v170 = vld [vmem:[%s140 + $0x8] sm:$0xff]
        %v171 = vld [vmem:[%s140 + $0x10] sm:$0xff]
        %v172 = vld [vmem:[%s140 + $0x18] sm:$0xff]
        %v173 = vld [vmem:[%s140 + $0x20] sm:$0xff]
        %v174 = vxor.u32 %v169, 2147483648
        %v175 = vxor.u32 %v170, 2147483648
        %v176 = vxor.u32 %v171, 2147483648
        %v177 = vxor.u32 %v172, 2147483648
        %v178 = vxor.u32 %v173, 2147483648
        %v179 = vmul.f32 %v174, 1.442695
        %v180 = vpow.pop %v179
        %v181 = vmul.f32 %v175, 1.442695
        %v182 = vpow.pop %v181
        %v183 = vmul.f32 %v176, 1.442695
        %v184 = vpow.pop %v183
        %v185 = vmul.f32 %v177, 1.442695
        %v186 = vpow.pop %v185
        %v187 = vmul.f32 %v178, 1.442695
        %v188 = vpow.pop %v187
        %v189 = vadd.f32 %v180, 1.0
        %v190 = vadd.f32 %v182, 1.0
        %v191 = vadd.f32 %v184, 1.0
        %v192 = vadd.f32 %v186, 1.0
        %v193 = vadd.f32 %v188, 1.0
        %v194 = vrcp.pop %v189
        %v195 = vmul.f32 %v189, %v194
        %v196 = vsub.f32 1.0, %v195
        %v197 = vmul.f32 %v194, %v196
        %v198 = vadd.f32 %v194, %v197
        %vm199 = vweird.f32 %v189
        %vm200 = vweird.f32 %v194
        %vm201 = vmor %vm199, %vm200
        %v202 = vsel %vm201, %v194, %v198
        %v203 = vand.u32 2147483647, %v189
        %vm204 = vcmp.eq.f32.partialorder %v203, 8.507059e+37
        %v205 = vand.u32 %v189, 2147483648
        %v206 = vor.u32 1.1754944e-38, %v205
        %v207 = vsel %vm204, %v206, %v202
        %v208 = vmul.f32 1.0, %v207
        %v209 = vrcp.pop %v190
        %v210 = vmul.f32 %v190, %v209
        %v211 = vsub.f32 1.0, %v210
        %v212 = vmul.f32 %v209, %v211
        %v213 = vadd.f32 %v209, %v212
        %vm214 = vweird.f32 %v190
        %vm215 = vweird.f32 %v209
        %vm216 = vmor %vm214, %vm215
        %v217 = vsel %vm216, %v209, %v213
        %v218 = vand.u32 2147483647, %v190
        %vm219 = vcmp.eq.f32.partialorder %v218, 8.507059e+37
        %v220 = vand.u32 %v190, 2147483648
        %v221 = vor.u32 1.1754944e-38, %v220
        %v222 = vsel %vm219, %v221, %v217
        %v223 = vmul.f32 1.0, %v222
        %v224 = vrcp.pop %v191
        %v225 = vmul.f32 %v191, %v224
        %v226 = vsub.f32 1.0, %v225
        %v227 = vmul.f32 %v224, %v226
        %v228 = vadd.f32 %v224, %v227
        %vm229 = vweird.f32 %v191
        %vm230 = vweird.f32 %v224
        %vm231 = vmor %vm229, %vm230
        %v232 = vsel %vm231, %v224, %v228
        %v233 = vand.u32 2147483647, %v191
        %vm234 = vcmp.eq.f32.partialorder %v233, 8.507059e+37
        %v235 = vand.u32 %v191, 2147483648
        %v236 = vor.u32 1.1754944e-38, %v235
        %v237 = vsel %vm234, %v236, %v232
        %v238 = vmul.f32 1.0, %v237
        %v239 = vrcp.pop %v192
        %v240 = vmul.f32 %v192, %v239
        %v241 = vsub.f32 1.0, %v240
        %v242 = vmul.f32 %v239, %v241
        %v243 = vadd.f32 %v239, %v242
        %vm244 = vweird.f32 %v192
        %vm245 = vweird.f32 %v239
        %vm246 = vmor %vm244, %vm245
        %v247 = vsel %vm246, %v239, %v243
        %v248 = vand.u32 2147483647, %v192
        %vm249 = vcmp.eq.f32.partialorder %v248, 8.507059e+37
        %v250 = vand.u32 %v192, 2147483648
        %v251 = vor.u32 1.1754944e-38, %v250
        %v252 = vsel %vm249, %v251, %v247
        %v253 = vmul.f32 1.0, %v252
        %v254 = vrcp.pop %v193
        %v255 = vmul.f32 %v193, %v254
        %v256 = vsub.f32 1.0, %v255
        %v257 = vmul.f32 %v254, %v256
        %v258 = vadd.f32 %v254, %v257
        %vm259 = vweird.f32 %v193
        %vm260 = vweird.f32 %v254
        %vm261 = vmor %vm259, %vm260
        %v262 = vsel %vm261, %v254, %v258
        %v263 = vand.u32 2147483647, %v193
        %vm264 = vcmp.eq.f32.partialorder %v263, 8.507059e+37
        %v265 = vand.u32 %v193, 2147483648
        %v266 = vor.u32 1.1754944e-38, %v265
        %v267 = vsel %vm264, %v266, %v262
        %v268 = vmul.f32 1.0, %v267
        %s269 = scalar_lea.vmem %s140, 40 [#allocation5]
        %v270 = vld [vmem:[%s269] sm:$0xff]
        %v271 = vld [vmem:[%s269 + $0x8] sm:$0xff]
        %v272 = vld [vmem:[%s269 + $0x10] sm:$0xff]
        %v273 = vld [vmem:[%s269 + $0x18] sm:$0xff]
        %v274 = vld [vmem:[%s269 + $0x20] sm:$0xff]
        %v275 = vxor.u32 %v270, 2147483648
        %v276 = vxor.u32 %v271, 2147483648
        %v277 = vxor.u32 %v272, 2147483648
        %v278 = vxor.u32 %v273, 2147483648
        %v279 = vxor.u32 %v274, 2147483648
        %v280 = vmul.f32 %v275, 1.442695
        %v281 = vpow.pop %v280
        %v282 = vmul.f32 %v276, 1.442695
        %v283 = vpow.pop %v282
        %v284 = vmul.f32 %v277, 1.442695
        %v285 = vpow.pop %v284
        %v286 = vmul.f32 %v278, 1.442695
        %v287 = vpow.pop %v286
        %v288 = vmul.f32 %v279, 1.442695
        %v289 = vpow.pop %v288
        %v290 = vadd.f32 %v281, 1.0
        %v291 = vadd.f32 %v283, 1.0
        %v292 = vadd.f32 %v285, 1.0
        %v293 = vadd.f32 %v287, 1.0
        %v294 = vadd.f32 %v289, 1.0
        %v295 = vrcp.pop %v290
        %v296 = vmul.f32 %v290, %v295
        %v297 = vsub.f32 1.0, %v296
        %v298 = vmul.f32 %v295, %v297
        %v299 = vadd.f32 %v295, %v298
        %vm300 = vweird.f32 %v290
        %vm301 = vweird.f32 %v295
        %vm302 = vmor %vm300, %vm301
        %v303 = vsel %vm302, %v295, %v299
        %v304 = vand.u32 2147483647, %v290
        %vm305 = vcmp.eq.f32.partialorder %v304, 8.507059e+37
        %v306 = vand.u32 %v290, 2147483648
        %v307 = vor.u32 1.1754944e-38, %v306
        %v308 = vsel %vm305, %v307, %v303
        %v309 = vmul.f32 1.0, %v308
        %v310 = vrcp.pop %v291
        %v311 = vmul.f32 %v291, %v310
        %v312 = vsub.f32 1.0, %v311
        %v313 = vmul.f32 %v310, %v312
        %v314 = vadd.f32 %v310, %v313
        %vm315 = vweird.f32 %v291
        %vm316 = vweird.f32 %v310
        %vm317 = vmor %vm315, %vm316
        %v318 = vsel %vm317, %v310, %v314
        %v319 = vand.u32 2147483647, %v291
        %vm320 = vcmp.eq.f32.partialorder %v319, 8.507059e+37
        %v321 = vand.u32 %v291, 2147483648
        %v322 = vor.u32 1.1754944e-38, %v321
        %v323 = vsel %vm320, %v322, %v318
        %v324 = vmul.f32 1.0, %v323
        %v325 = vrcp.pop %v292
        %v326 = vmul.f32 %v292, %v325
        %v327 = vsub.f32 1.0, %v326
        %v328 = vmul.f32 %v325, %v327
        %v329 = vadd.f32 %v325, %v328
        %vm330 = vweird.f32 %v292
        %vm331 = vweird.f32 %v325
        %vm332 = vmor %vm330, %vm331
        %v333 = vsel %vm332, %v325, %v329
        %v334 = vand.u32 2147483647, %v292
        %vm335 = vcmp.eq.f32.partialorder %v334, 8.507059e+37
        %v336 = vand.u32 %v292, 2147483648
        %v337 = vor.u32 1.1754944e-38, %v336
        %v338 = vsel %vm335, %v337, %v333
        %v339 = vmul.f32 1.0, %v338
        %v340 = vrcp.pop %v293
        %v341 = vmul.f32 %v293, %v340
        %v342 = vsub.f32 1.0, %v341
        %v343 = vmul.f32 %v340, %v342
        %v344 = vadd.f32 %v340, %v343
        %vm345 = vweird.f32 %v293
        %vm346 = vweird.f32 %v340
        %vm347 = vmor %vm345, %vm346
        %v348 = vsel %vm347, %v340, %v344
        %v349 = vand.u32 2147483647, %v293
        %vm350 = vcmp.eq.f32.partialorder %v349, 8.507059e+37
        %v351 = vand.u32 %v293, 2147483648
        %v352 = vor.u32 1.1754944e-38, %v351
        %v353 = vsel %vm350, %v352, %v348
        %v354 = vmul.f32 1.0, %v353
        %v355 = vrcp.pop %v294
        %v356 = vmul.f32 %v294, %v355
        %v357 = vsub.f32 1.0, %v356
        %v358 = vmul.f32 %v355, %v357
        %v359 = vadd.f32 %v355, %v358
        %vm360 = vweird.f32 %v294
        %vm361 = vweird.f32 %v355
        %vm362 = vmor %vm360, %vm361
        %v363 = vsel %vm362, %v355, %v359
        %v364 = vand.u32 2147483647, %v294
        %vm365 = vcmp.eq.f32.partialorder %v364, 8.507059e+37
        %v366 = vand.u32 %v294, 2147483648
        %v367 = vor.u32 1.1754944e-38, %v366
        %v368 = vsel %vm365, %v367, %v363
        %v369 = vmul.f32 1.0, %v368
        %s370 = sld [smem:[#allocation4]]
        %v371 = vstv %s370
        %v372 = vsub.f32 %v371, %v208
        %v373 = vsub.f32 %v371, %v223
        %v374 = vsub.f32 %v371, %v238
        %v375 = vsub.f32 %v371, %v253
        %v376 = vsub.f32 %v371, %v268
        %v377 = vadd.f32 %v372, %v309
        %v378 = vadd.f32 %v373, %v324
        %v379 = vadd.f32 %v374, %v339
        %v380 = vadd.f32 %v375, %v354
        %v381 = vadd.f32 %v376, %v369
        %v382 = vmax.f32 %v377, 0.0
        %v383 = vmax.f32 %v378, 0.0
        %v384 = vmax.f32 %v379, 0.0
        %v385 = vmax.f32 %v380, 0.0
        %v386 = vmax.f32 %v381, 0.0
        %s387 = sadd.s32 %s24, %s25
        %v388 = vlaneseq
        %v389 = vshrl.u32 %v388, 7
        %v390 = vadd.s32 %v389, 8
        %v391 = vadd.s32 %v389, 16
        %v392 = vadd.s32 %v389, 24
        %v393 = vadd.s32 %v389, 32
        %v394 = vlaneseq
        %v395 = vand.u32 %v394, 127
        %s396 = smul.u32 %s387, 40
        %v397 = vstv %s396
        %v398 = vadd.s32 %v397, %v389
        %v399 = vadd.s32 %v397, %v390
        %v400 = vadd.s32 %v397, %v391
        %v401 = vadd.s32 %v397, %v392
        %v402 = vadd.s32 %v397, %v393
        %v403 = vmul.u32 %v398, 128
        %v404 = vmul.u32 %v399, 128
        %v405 = vmul.u32 %v400, 128
        %v406 = vmul.u32 %v401, 128
        %v407 = vmul.u32 %v402, 128
        %v408 = vadd.s32 %v403, %v395
        %v409 = vadd.s32 %v404, %v395
        %v410 = vadd.s32 %v405, %v395
        %v411 = vadd.s32 %v406, %v395
        %v412 = vadd.s32 %v407, %v395
        %vm413 = vcmp.lt.s32.totalorder %v408, 4099
        %vm414 = vcmp.lt.s32.totalorder %v409, 4099
        %vm415 = vcmp.lt.s32.totalorder %v410, 4099
        %vm416 = vcmp.lt.s32.totalorder %v411, 4099
        %vm417 = vcmp.lt.s32.totalorder %v412, 4099
        %v418 = vsel %vm413, %v382, 0.0
        %v419 = vsel %vm414, %v383, 0.0
        %v420 = vsel %vm415, %v384, 0.0
        %v421 = vsel %vm416, %v385, 0.0
        %v422 = vsel %vm417, %v386, 0.0
        %v423 = vld [vmem:[#allocation2] sm:$0xff]
        %v424 = vadd.f32 %v418, %v419
        %v425 = vadd.f32 %v424, %v420
        %v426 = vadd.f32 %v425, %v421
        %v427 = vadd.f32 %v426, %v422
        %v428 = vadd.f32 %v423, %v427
        %429 = vst [vmem:[#allocation2] sm:$0xff] %v428
        // Predicated region
        $region33: #{tpu_custom_call.1} parent=23 // pred_check
          %p430 = pneg %p164
        $region34: #{tpu_custom_call.1} parent=23 // pred_check_branch
          %432 = sbr.rel (%p430) target = $region36
        $region35: #{tpu_custom_call.1} parent=23 // pred_region
          %v433 = vld [vmem:[#allocation2] sm:$0xff]
          %434 = vst [vmem:[%s159] sm:$0xff] %v433
        $region36: #{tpu_custom_call.1} parent=23 // pred_fallthru
          _
        %s435 = sand.u32 %s72, 1
        %s436 = scalar_lea.sflag [#allocation7], %s435
        %s437 = sand.u32 %s72, 1
        %s438 = smul.addr %s437, 8
        %s439 = scalar_lea.vmem [#allocation8], %s438
        // Predicated region
        $region37: #{tpu_custom_call.1} parent=23 // pred_check
          %p440 = pneg %p82
        $region38: #{tpu_custom_call.1} parent=23 // pred_check_branch
          %442 = sbr.rel (%p440) target = $region40
        $region39: #{tpu_custom_call.1} parent=23 // pred_region
          %444 = vsyncadd %s436, 0
          %s445 = smul.addr %s24, 8
          %s446 = scalar_lea.hbm %s2, %s445
          %s448 = sshll.u32 %s439, 4
          %s449 = int_to_ptr.vmem [resolvable:$true] %s448
          %s450 = sshll.u32 %s446, 4
          %s451 = int_to_ptr.hbm [resolvable:$true] %s450
          %453 = dma.vmem_to_hbm [thread:$0]  %s449, 128, %s451, %s436
        $region40: #{tpu_custom_call.1} parent=23 // pred_fallthru
          _
      $region24: #{tpu_custom_call.1} parent=5 // pred_fallthru
        _
      %p454 = scmp.le.s32.totalorder 2, %s15
      // Predicated region
      $region41: #{tpu_custom_call.1} parent=5 // pred_check
        %p455 = pneg %p454
      $region42: #{tpu_custom_call.1} parent=5 // pred_check_branch
        %457 = sbr.rel (%p455) target = $region44
      $region43: #{tpu_custom_call.1} parent=5 // pred_region
        %s458 = ssub.s32 %s15, 2
        // Predicated region
        $region45: #{tpu_custom_call.1} parent=43 // pred_check
          %p459 = pneg %p88
        $region46: #{tpu_custom_call.1} parent=43 // pred_check_branch
          %461 = sbr.rel (%p459) target = $region48
        $region47: #{tpu_custom_call.1} parent=43 // pred_region
          %s462 = sand.u32 %s73, 1
          %s463 = scalar_lea.sflag [#allocation7], %s462
          %s464 = sand.u32 %s73, 1
          %s465 = smul.addr %s464, 8
          %s466 = scalar_lea.vmem [#allocation8], %s465
          %468 = dma.done %s463, 128
        $region48: #{tpu_custom_call.1} parent=43 // pred_fallthru
          _
      $region44: #{tpu_custom_call.1} parent=5 // pred_fallthru
        _
    $region6: #{tpu_custom_call.1} parent=1 // loop_footer
      %s19 = sadd.s32 1, %s15
    $region7: #{tpu_custom_call.1} parent=1 // loop_footer_branch
      %14 = sbr.rel target = $region3
    $region8: #{tpu_custom_call.1} parent=1 // loop_exit
      _
    %469 = vsyncpa [#allocation6], 1
    %s470 = scalar_lea.sflag [#allocation6], 1
    %471 = vsyncpa %s470, 1
    %472 = vsyncpa [#allocation7], 1
    %s473 = scalar_lea.sflag [#allocation7], 1
    %474 = vsyncpa %s473, 1

</llo_original>
